<compile_context>
chip_gen: v5e
topology: v5e:2x2
jax: 0.10.0
libtpu: 0.0.40
codegen_flags: <defaults>
</compile_context>

<pallas_src>
import jax
import jax.numpy as jnp
from jax.experimental import pallas as pl
from jax.experimental.pallas import tpu as pltpu

LANE = 128
SUBLANE = 8


# ---------------------------------------------------------------------------
# Shared layout helpers
# ---------------------------------------------------------------------------
def _round_up(n: int, m: int) -> int:
    return ((n + m - 1) // m) * m


def _param_dims(num_inputs: int, hidden_size: int):
    """Padded layer dims + packed-buffer geometry (shared by pack + forward)."""
    h_p = max(LANE, _round_up(hidden_size, LANE))          # hidden, lane-padded
    w_rows = max(h_p, _round_up(num_inputs, SUBLANE))      # weight rows region
    w_cols = max(h_p, LANE)                                # weight cols region
    return h_p, w_rows, w_cols


def _batch_tiling(B: int):
    """Pick 128-row chunks per tile. grid>=2 whenever B>1024 (v7x: 2 TCs)."""
    if B <= 1024:
        tile_chunks = pl.cdiv(B, LANE)       # 1..8 chunks, single grid step
    elif B <= 4096:
        tile_chunks = 8                      # 1024-row tiles, grid 2..4
    else:
        tile_chunks = 16                     # 2048-row tiles, grid >= 3
    tile_b = tile_chunks * LANE
    grid_b = pl.cdiv(B, tile_b)
    return tile_b, tile_chunks, grid_b


# ---------------------------------------------------------------------------
# Kernel
# ---------------------------------------------------------------------------
def make_critic_kernel(num_inputs: int, h_p: int, w_rows: int, tile_chunks: int):
    """Kernel closed over static dims.

    Packed parameter layout (single f32 buffer, shape [3, w_rows + 8, w_cols]):
      params[l, :fan_in, :fan_out]  = W_l  (stored [in, out])
      params[l, w_rows, :fan_out]   = b_l
    Everything else is zero, so padded lanes/rows contribute exactly 0
    (tanh(0) == 0, so the zero-padding is self-consistent across layers).
    """

    def critic_kernel(x_ref, p_ref, v_ref):
        # x_ref: [tile_b, num_inputs] (unpadded lanes)
        # v_ref: [tile_chunks, 128]   (value of batch row c*128+j at [c, j])
        w1 = p_ref[0, :num_inputs, :h_p]                 # [num_inputs, h_p]
        b1 = p_ref[0, w_rows:w_rows + 1, :h_p]           # [1, h_p]
        w2 = p_ref[1, :h_p, :h_p]
        b2 = p_ref[1, w_rows:w_rows + 1, :h_p]
        w3 = p_ref[2, :h_p, :LANE]                       # value head in col 0
        b3 = p_ref[2, w_rows:w_rows + 1, :LANE]

        # Process the batch tile in 128-row sub-blocks: keeps vreg live ranges
        # bounded and lets us transpose each sub-block's value column into a
        # lane-dense output row (128x smaller writeback).
        for c in range(tile_chunks):
            xc = x_ref[c * LANE:(c + 1) * LANE, :]       # [128, num_inputs]
            h1 = jnp.tanh(
                jnp.dot(xc, w1, preferred_element_type=jnp.float32) + b1)
            h2 = jnp.tanh(
                jnp.dot(h1, w2, preferred_element_type=jnp.float32) + b2)
            vs = jnp.dot(h2, w3, preferred_element_type=jnp.float32) + b3
            # vs: [128, 128], value sits in column 0 (other cols are exactly 0).
            # Compact: batch rows -> lanes via an XLU transpose, write one row.
            v_ref[c:c + 1, :] = vs.T[0:1, :].astype(v_ref.dtype)

    return critic_kernel


# ---------------------------------------------------------------------------
# Wrapper
# ---------------------------------------------------------------------------
def critic_forward(x, packed_params, num_inputs, hidden_size):
    """x: [B, num_inputs] float32. Returns v: [B, 1] float32."""
    B = x.shape[0]
    h_p, w_rows, _ = _param_dims(num_inputs, hidden_size)
    tile_b, tile_chunks, grid_b = _batch_tiling(B)

    x_in = x.astype(jnp.float32)
    if grid_b == 1 and B != tile_b:
        # Row-pad only (<=127 rows of num_inputs lanes -> a few KiB); no lane pad.
        x_in = jnp.zeros((tile_b, num_inputs), jnp.float32).at[:B, :].set(x_in)
    # grid_b > 1: rely on Pallas' ragged last block; OOB rows are garbage but
    # row-independent and sliced off below (never consumed).

    out_rows = grid_b * tile_chunks

    # Cost estimate from real dims / actual HBM traffic (not padded slabs).
    flops = 2 * B * (num_inputs * hidden_size
                     + hidden_size * hidden_size
                     + hidden_size * 1)
    transcendentals = 2 * B * hidden_size
    bytes_accessed = (x_in.size + packed_params.size + out_rows * LANE) * 4

    v_packed = pl.pallas_call(
        make_critic_kernel(num_inputs, h_p, w_rows, tile_chunks),
        out_shape=jax.ShapeDtypeStruct((out_rows, LANE), jnp.float32),
        grid=(grid_b,),
        in_specs=[
            # x: unpadded lanes (last block dim == full array dim is legal).
            pl.BlockSpec((tile_b, num_inputs), lambda i: (i, 0)),
            # params: resident across the grid (constant index_map -> 1 DMA).
            pl.BlockSpec(packed_params.shape, lambda i: (0, 0, 0)),
        ],
        # Lane-dense compact output: 4 B of writeback per batch row.
        out_specs=pl.BlockSpec((tile_chunks, LANE), lambda i: (i, 0)),
        compiler_params=pltpu.CompilerParams(
            dimension_semantics=("parallel",)),
        cost_estimate=pl.CostEstimate(
            flops=flops,
            transcendentals=transcendentals,
            bytes_accessed=bytes_accessed),
    )(x_in, packed_params)

    # out[c*128 + j] corresponds to batch row c*128 + j (row-major), so a flat
    # reshape restores batch order; padded tail rows are discarded here.
    return v_packed.reshape(-1)[:B].reshape(B, 1)


# ---------------------------------------------------------------------------
# Parameter init (mimics PyTorch nn.Linear defaults + Critic tweaks) & packing
# ---------------------------------------------------------------------------
def init_critic_params(key, num_inputs, hidden_size):
    """U[-1/sqrt(fan_in), +1/sqrt(fan_in)]; fc3.weight *= 0.1, fc3.bias = 0.
    Weights stored [in, out]."""
    k1, k2, k3, k4, k5, k6 = jax.random.split(key, 6)

    def linear(kw, kb, fan_in, fan_out):
        bound = 1.0 / jnp.sqrt(jnp.float32(fan_in))
        w = jax.random.uniform(kw, (fan_in, fan_out), jnp.float32,
                               minval=-bound, maxval=bound)
        b = jax.random.uniform(kb, (fan_out,), jnp.float32,
                               minval=-bound, maxval=bound)
        return w, b

    w1, b1 = linear(k1, k2, num_inputs, hidden_size)
    w2, b2 = linear(k3, k4, hidden_size, hidden_size)
    w3, b3 = linear(k5, k6, hidden_size, 1)
    return (w1, b1, w2, b2, w3 * 0.1, b3 * 0.0)


def pack_critic_params(raw_params, num_inputs, hidden_size):
    """Pack all weights+biases into one zero-padded (8,128)-aligned f32 buffer
    of shape [3, w_rows + 8, w_cols] so the kernel needs a single param DMA."""
    w1, b1, w2, b2, w3, b3 = raw_params
    h_p, w_rows, w_cols = _param_dims(num_inputs, hidden_size)
    packed = jnp.zeros((3, w_rows + SUBLANE, w_cols), jnp.float32)

    def put(buf, layer, w, b):
        r, c = w.shape
        buf = buf.at[layer, :r, :c].set(w)
        buf = buf.at[layer, w_rows, :c].set(b)
        return buf

    packed = put(packed, 0, w1, b1)
    packed = put(packed, 1, w2, b2)
    packed = put(packed, 2, w3, b3)
    return packed


def critic_reference(x, raw_params):
    """Pure-JAX reference (matches the PyTorch Critic.forward)."""
    w1, b1, w2, b2, w3, b3 = raw_params
    h1 = jnp.tanh(x @ w1 + b1)
    h2 = jnp.tanh(h1 @ w2 + b2)
    return h2 @ w3 + b3


# ---------------------------------------------------------------------------
# Self-test
# ---------------------------------------------------------------------------
if __name__ == "__main__":
    num_inputs = 8
    hidden_size = 32

    key = jax.random.PRNGKey(0)
    kx, kp = jax.random.split(key)
    raw_params = init_critic_params(kp, num_inputs, hidden_size)
    packed = pack_critic_params(raw_params, num_inputs, hidden_size)

    fwd = jax.jit(critic_forward, static_argnums=(2, 3))

    # batch=2: required small case (single tile, row-padded to 128).
    # batch=300: single tile, 3 output chunks.
    # batch=1500: multi-tile grid (2 steps) with a ragged last input block.
    for batch in (2, 300, 1500):
        x = jax.random.normal(jax.random.fold_in(kx, batch),
                              (batch, num_inputs), jnp.float32)
        v = jax.block_until_ready(fwd(x, packed, num_inputs, hidden_size))
        v_ref = critic_reference(x, raw_params)
        assert v.shape == (batch, 1), v.shape
        assert jnp.allclose(v, v_ref, atol=1e-4, rtol=1e-4), (
            batch, float(jnp.max(jnp.abs(v - v_ref))))

    print("KERNEL_OK")
</pallas_src>

<mosaic_0001>
module attributes {stable_mosaic.version = 11 : i64} {
  func.func @critic_kernel(%arg0: i32, %arg1: memref<128x8xf32, #tpu.memory_space<vmem>>, %arg2: memref<3x136x128xf32, #tpu.memory_space<vmem>>, %arg3: memref<1x128xf32, #tpu.memory_space<vmem>>) attributes {dimension_semantics = [#tpu.dimension_semantics<parallel>], iteration_bounds = array<i64: 1>, scalar_prefetch = 0 : i64, scratch_operands = 0 : i64, tpu.core_type = #tpu.core_type<tc>, window_params = [{transform_indices = @transform_0, window_bounds = array<i64: 128, 8>}, {pipeline_mode = #tpu.pipeline_mode<synchronous>, transform_indices = @transform_1, window_bounds = array<i64: 3, 136, 128>}, {transform_indices = @transform_2, window_bounds = array<i64: 1, 128>}]} {
    %c0 = arith.constant 0 : index
    %c0_0 = arith.constant 0 : index
    %c0_1 = arith.constant 0 : index
    %0 = vector.load %arg2[%c0, %c0_0, %c0_1] : memref<3x136x128xf32, #tpu.memory_space<vmem>>, vector<1x8x128xf32>
    %1 = vector.shape_cast %0 : vector<1x8x128xf32> to vector<8x128xf32>
    %c0_2 = arith.constant 0 : index
    %c128 = arith.constant 128 : index
    %c0_3 = arith.constant 0 : index
    %2 = vector.load %arg2[%c0_2, %c128, %c0_3] : memref<3x136x128xf32, #tpu.memory_space<vmem>>, vector<1x1x128xf32>
    %3 = vector.shape_cast %2 : vector<1x1x128xf32> to vector<1x128xf32>
    %c1 = arith.constant 1 : index
    %c0_4 = arith.constant 0 : index
    %c0_5 = arith.constant 0 : index
    %4 = vector.load %arg2[%c1, %c0_4, %c0_5] : memref<3x136x128xf32, #tpu.memory_space<vmem>>, vector<1x128x128xf32>
    %5 = vector.shape_cast %4 : vector<1x128x128xf32> to vector<128x128xf32>
    %c1_6 = arith.constant 1 : index
    %c128_7 = arith.constant 128 : index
    %c0_8 = arith.constant 0 : index
    %6 = vector.load %arg2[%c1_6, %c128_7, %c0_8] : memref<3x136x128xf32, #tpu.memory_space<vmem>>, vector<1x1x128xf32>
    %7 = vector.shape_cast %6 : vector<1x1x128xf32> to vector<1x128xf32>
    %c2 = arith.constant 2 : index
    %c0_9 = arith.constant 0 : index
    %c0_10 = arith.constant 0 : index
    %8 = vector.load %arg2[%c2, %c0_9, %c0_10] : memref<3x136x128xf32, #tpu.memory_space<vmem>>, vector<1x128x128xf32>
    %9 = vector.shape_cast %8 : vector<1x128x128xf32> to vector<128x128xf32>
    %c2_11 = arith.constant 2 : index
    %c128_12 = arith.constant 128 : index
    %c0_13 = arith.constant 0 : index
    %10 = vector.load %arg2[%c2_11, %c128_12, %c0_13] : memref<3x136x128xf32, #tpu.memory_space<vmem>>, vector<1x1x128xf32>
    %11 = vector.shape_cast %10 : vector<1x1x128xf32> to vector<1x128xf32>
    %c0_14 = arith.constant 0 : index
    %c0_15 = arith.constant 0 : index
    %12 = vector.load %arg1[%c0_14, %c0_15] : memref<128x8xf32, #tpu.memory_space<vmem>>, vector<128x8xf32>
    %cst = arith.constant dense<0.000000e+00> : vector<128x128xf32>
    %13 = tpu.matmul %12, %1, %cst {dimension_numbers = #tpu.dot_dimension_numbers<[1], [0], [0], [1], [0, 0, 1, 1], [], []>} : vector<128x8xf32>, vector<8x128xf32>, vector<128x128xf32> -> vector<128x128xf32>
    %14 = vector.broadcast %3 : vector<1x128xf32> to vector<128x128xf32>
    %15 = arith.addf %13, %14 : vector<128x128xf32>
    %16 = math.tanh %15 : vector<128x128xf32>
    %cst_16 = arith.constant dense<0.000000e+00> : vector<128x128xf32>
    %17 = tpu.matmul %16, %5, %cst_16 {dimension_numbers = #tpu.dot_dimension_numbers<[1], [0], [0], [1], [0, 0, 1, 1], [], []>} : vector<128x128xf32>, vector<128x128xf32>, vector<128x128xf32> -> vector<128x128xf32>
    %18 = vector.broadcast %7 : vector<1x128xf32> to vector<128x128xf32>
    %19 = arith.addf %17, %18 : vector<128x128xf32>
    %20 = math.tanh %19 : vector<128x128xf32>
    %cst_17 = arith.constant dense<0.000000e+00> : vector<128x128xf32>
    %21 = tpu.matmul %20, %9, %cst_17 {dimension_numbers = #tpu.dot_dimension_numbers<[1], [0], [0], [1], [0, 0, 1, 1], [], []>} : vector<128x128xf32>, vector<128x128xf32>, vector<128x128xf32> -> vector<128x128xf32>
    %22 = vector.broadcast %11 : vector<1x128xf32> to vector<128x128xf32>
    %23 = arith.addf %21, %22 : vector<128x128xf32>
    %24 = tpu.transpose %23, [1, 0] : vector<128x128xf32> -> vector<128x128xf32>
    %25 = vector.extract_strided_slice %24 {offsets = [0, 0], sizes = [1, 128], strides = [1, 1]} : vector<128x128xf32> to vector<1x128xf32>
    %c0_18 = arith.constant 0 : index
    %c0_19 = arith.constant 0 : index
    %26 = vector.load %arg3[%c0_18, %c0_19] : memref<1x128xf32, #tpu.memory_space<vmem>>, vector<1x128xf32>
    tpu.vector_store %arg3[%c0_18, %c0_19], %25 {strides = array<i32>} : memref<1x128xf32, #tpu.memory_space<vmem>>, vector<1x128xf32>,
    return
  }
  func.func @transform_0(%arg0: i32) -> (i32, i32) {
    %c0_i32 = arith.constant 0 : i32
    %c0_i32_0 = arith.constant 0 : i32
    return %arg0, %c0_i32 : i32, i32
  }
  func.func @transform_1(%arg0: i32) -> (i32, i32, i32) {
    %c0_i32 = arith.constant 0 : i32
    %c0_i32_0 = arith.constant 0 : i32
    %c0_i32_1 = arith.constant 0 : i32
    %c0_i32_2 = arith.constant 0 : i32
    return %c0_i32, %c0_i32_0, %c0_i32_1 : i32, i32, i32
  }
  func.func @transform_2(%arg0: i32) -> (i32, i32) {
    %c0_i32 = arith.constant 0 : i32
    %c0_i32_0 = arith.constant 0 : i32
    return %arg0, %c0_i32 : i32, i32
  }
}

</mosaic_0001>

<llo_original>
// kernel: critic_forward.1
$region0: #{critic_forward.1}
  #allocation0 [shape = 'u32[]', space=smem, size = 0x4, offset = 0x4, fixed_abs, tag = 'smem constant byte address 0x4 - core index']
  #allocation1 [shape = 'u32[72,128]{1,0:T(1,128)}', space=vmem, size = 0x9000, scoped, tag = 'internal scratch']
  %s0 = inlined_call_operand.vmem [shape: f32[128,8], index: 0, kind: input, shape index: {}]
  %s1 = inlined_call_operand.hbm [shape: f32[3,136,128], index: 1, kind: input, shape index: {}]
  %s2 = inlined_call_operand.vmem [shape: f32[1,128], index: 2, kind: output, shape index: {}]
  %s3 = sld [smem:[#allocation0]]
  $region22: #{critic_forward.1} parent=0
    _
  %s5 = ssub.s32 1, %s3
  %s6 = scalar_select 0, %s5, %s3
  $region1: #{critic_forward.1} parent=0
    #allocation2 [shape = 'u8[208896]{0}', space=vmem, size = 0x33000, scoped, tag = 'input window, operand 1, single buffered']
    #allocation3 [shape = 's32[1]{0}', space=sflag, size = 0x4, scoped, tag = 'scoped memory for critic_forward.1']
    %7 = vsyncpa [#allocation3], 0
    // Predicated region
    $region2: #{critic_forward.1} parent=1 // pred_check
      _
    $region3: #{critic_forward.1} parent=1 // pred_check_branch
      %9 = sbr.rel (0) target = $region5
    $region4: #{critic_forward.1} parent=1 // pred_region
      _
    $region5: #{critic_forward.1} parent=1 // pred_fallthru
      _
    // Predicated region
    $region6: #{critic_forward.1} parent=1 // pred_check
      _
    $region7: #{critic_forward.1} parent=1 // pred_check_branch
      %11 = sbr.rel (0) target = $region9
    $region8: #{critic_forward.1} parent=1 // pred_region
      %13 = vsyncadd [#allocation3], 0
      %s14 = sshll.u32 %s1, 4
      %s15 = int_to_ptr.hbm [resolvable:$true] %s14
      %s16 = sshll.u32 [#allocation2], 4
      %s17 = int_to_ptr.vmem [resolvable:$true] %s16
      %22 = dma.hbm_to_vmem [thread:$0]  %s15, 6528, %s17, [#allocation3], 128, 128, 8
    $region9: #{critic_forward.1} parent=1 // pred_fallthru
      _
    // Predicated region
    $region10: #{critic_forward.1} parent=1 // pred_check
      _
    $region11: #{critic_forward.1} parent=1 // pred_check_branch
      %24 = sbr.rel (0) target = $region13
    $region12: #{critic_forward.1} parent=1 // pred_region
      %26 = dma.done [#allocation3], 6528
    $region13: #{critic_forward.1} parent=1 // pred_fallthru
      _
    %v27 = vld [vmem:[#allocation2] sm:$0xff]
    %v28 = vld [vmem:[#allocation2 + $0x80] sm:$0x1]
    %s29 = scalar_lea.vmem [#allocation2], 136
    %v30 = vld [vmem:[%s29] sm:$0xff]
    %v31 = vld [vmem:[%s29 + $0x8] sm:$0xff]
    %v32 = vld [vmem:[%s29 + $0x10] sm:$0xff]
    %v33 = vld [vmem:[%s29 + $0x18] sm:$0xff]
    %v34 = vld [vmem:[%s29 + $0x20] sm:$0xff]
    %v35 = vld [vmem:[%s29 + $0x28] sm:$0xff]
    %v36 = vld [vmem:[%s29 + $0x30] sm:$0xff]
    %v37 = vld [vmem:[%s29 + $0x38] sm:$0xff]
    %v38 = vld [vmem:[%s29 + $0x40] sm:$0xff]
    %v39 = vld [vmem:[%s29 + $0x48] sm:$0xff]
    %v40 = vld [vmem:[%s29 + $0x50] sm:$0xff]
    %v41 = vld [vmem:[%s29 + $0x58] sm:$0xff]
    %v42 = vld [vmem:[%s29 + $0x60] sm:$0xff]
    %v43 = vld [vmem:[%s29 + $0x68] sm:$0xff]
    %v44 = vld [vmem:[%s29 + $0x70] sm:$0xff]
    %v45 = vld [vmem:[%s29 + $0x78] sm:$0xff]
    %v46 = vld [vmem:[%s29 + $0x80] sm:$0x1]
    %s47 = scalar_lea.vmem [#allocation2], 272
    %v48 = vld [vmem:[%s47] sm:$0xff]
    %v49 = vld [vmem:[%s47 + $0x8] sm:$0xff]
    %v50 = vld [vmem:[%s47 + $0x10] sm:$0xff]
    %v51 = vld [vmem:[%s47 + $0x18] sm:$0xff]
    %v52 = vld [vmem:[%s47 + $0x20] sm:$0xff]
    %v53 = vld [vmem:[%s47 + $0x28] sm:$0xff]
    %v54 = vld [vmem:[%s47 + $0x30] sm:$0xff]
    %v55 = vld [vmem:[%s47 + $0x38] sm:$0xff]
    %v56 = vld [vmem:[%s47 + $0x40] sm:$0xff]
    %v57 = vld [vmem:[%s47 + $0x48] sm:$0xff]
    %v58 = vld [vmem:[%s47 + $0x50] sm:$0xff]
    %v59 = vld [vmem:[%s47 + $0x58] sm:$0xff]
    %v60 = vld [vmem:[%s47 + $0x60] sm:$0xff]
    %v61 = vld [vmem:[%s47 + $0x68] sm:$0xff]
    %v62 = vld [vmem:[%s47 + $0x70] sm:$0xff]
    %v63 = vld [vmem:[%s47 + $0x78] sm:$0xff]
    %v64 = vld [vmem:[%s47 + $0x80] sm:$0x1]
    %v65 = vld [vmem:[%s0] sm:$0xff]
    %v66 = vld [vmem:[%s0 + $0x8] sm:$0xff]
    %v67 = vld [vmem:[%s0 + $0x10] sm:$0xff]
    %v68 = vld [vmem:[%s0 + $0x18] sm:$0xff]
    %v69 = vld [vmem:[%s0 + $0x20] sm:$0xff]
    %v70 = vld [vmem:[%s0 + $0x28] sm:$0xff]
    %v71 = vld [vmem:[%s0 + $0x30] sm:$0xff]
    %v72 = vld [vmem:[%s0 + $0x38] sm:$0xff]
    %v73 = vld [vmem:[%s0 + $0x40] sm:$0xff]
    %v74 = vld [vmem:[%s0 + $0x48] sm:$0xff]
    %v75 = vld [vmem:[%s0 + $0x50] sm:$0xff]
    %v76 = vld [vmem:[%s0 + $0x58] sm:$0xff]
    %v77 = vld [vmem:[%s0 + $0x60] sm:$0xff]
    %v78 = vld [vmem:[%s0 + $0x68] sm:$0xff]
    %v79 = vld [vmem:[%s0 + $0x70] sm:$0xff]
    %v80 = vld [vmem:[%s0 + $0x78] sm:$0xff]
    %v81 = vperm.slane %v28, 0
    %vm82 = vcmask 64512
    %v84 = vsel %vm82, %v65, 0
    %v87 = vsel %vm82, %v66, 0
    %v90 = vsel %vm82, %v67, 0
    %v93 = vsel %vm82, %v68, 0
    %v96 = vsel %vm82, %v69, 0
    %v99 = vsel %vm82, %v70, 0
    %v102 = vsel %vm82, %v71, 0
    %v105 = vsel %vm82, %v72, 0
    %v108 = vsel %vm82, %v73, 0
    %v111 = vsel %vm82, %v74, 0
    %v114 = vsel %vm82, %v75, 0
    %v117 = vsel %vm82, %v76, 0
    %v120 = vsel %vm82, %v77, 0
    %v123 = vsel %vm82, %v78, 0
    %v126 = vsel %vm82, %v79, 0
    %v129 = vsel %vm82, %v80, 0
    %131 = vmatpush.msra.mxu0 0.0
    %132 = vmatpush.msra.mxu0 0.0
    %133 = vmatpush.msra.mxu0 0.0
    %134 = vmatpush.msra.mxu0 0.0
    %135 = vmatpush.msra.mxu0 0.0
    %136 = vmatpush.msra.mxu0 0.0
    %137 = vmatpush.msra.mxu0 0.0
    %138 = vmatpush.msra.mxu0 0.0
    %139 = vmatpush.msra.mxu0 0.0
    %140 = vmatpush.msra.mxu0 0.0
    %141 = vmatpush.msra.mxu0 0.0
    %142 = vmatpush.msra.mxu0 0.0
    %143 = vmatpush.msra.mxu0 0.0
    %144 = vmatpush.msra.mxu0 0.0
    %145 = vmatpush.msra.mxu0 0.0
    %146 = vmatpush.msra.mxu0 %v27
    %147 = vmatmul.f32.gmra.mxu0 %v84
    %v148 = vpop.f32.mrf.mxu0
    %v149 = vadd.f32 %v81, %v148
    %150 = vmatmul.f32.gmra.mxu0 %v87
    %v151 = vpop.f32.mrf.mxu0
    %v152 = vadd.f32 %v81, %v151
    %153 = vmatmul.f32.gmra.mxu0 %v90
    %v154 = vpop.f32.mrf.mxu0
    %v155 = vadd.f32 %v81, %v154
    %156 = vmatmul.f32.gmra.mxu0 %v93
    %v157 = vpop.f32.mrf.mxu0
    %v158 = vadd.f32 %v81, %v157
    %159 = vmatmul.f32.gmra.mxu0 %v96
    %v160 = vpop.f32.mrf.mxu0
    %v161 = vadd.f32 %v81, %v160
    %162 = vmatmul.f32.gmra.mxu0 %v99
    %v163 = vpop.f32.mrf.mxu0
    %v164 = vadd.f32 %v81, %v163
    %165 = vmatmul.f32.gmra.mxu0 %v102
    %v166 = vpop.f32.mrf.mxu0
    %v167 = vadd.f32 %v81, %v166
    %168 = vmatmul.f32.gmra.mxu0 %v105
    %v169 = vpop.f32.mrf.mxu0
    %v170 = vadd.f32 %v81, %v169
    %171 = vmatmul.f32.gmra.mxu0 %v108
    %v172 = vpop.f32.mrf.mxu0
    %v173 = vadd.f32 %v81, %v172
    %174 = vmatmul.f32.gmra.mxu0 %v111
    %v175 = vpop.f32.mrf.mxu0
    %v176 = vadd.f32 %v81, %v175
    %177 = vmatmul.f32.gmra.mxu0 %v114
    %v178 = vpop.f32.mrf.mxu0
    %v179 = vadd.f32 %v81, %v178
    %180 = vmatmul.f32.gmra.mxu0 %v117
    %v181 = vpop.f32.mrf.mxu0
    %v182 = vadd.f32 %v81, %v181
    %183 = vmatmul.f32.gmra.mxu0 %v120
    %v184 = vpop.f32.mrf.mxu0
    %v185 = vadd.f32 %v81, %v184
    %186 = vmatmul.f32.gmra.mxu0 %v123
    %v187 = vpop.f32.mrf.mxu0
    %v188 = vadd.f32 %v81, %v187
    %189 = vmatmul.f32.gmra.mxu0 %v126
    %v190 = vpop.f32.mrf.mxu0
    %v191 = vadd.f32 %v81, %v190
    %192 = vmatmul.f32.gmra.mxu0 %v129
    %v193 = vpop.f32.mrf.mxu0
    %v194 = vadd.f32 %v81, %v193
    %195 = vdwg.mxu0
    %v196 = vtanh.pop %v149
    %v197 = vtanh.pop %v152
    %v198 = vtanh.pop %v155
    %v199 = vtanh.pop %v158
    %v200 = vtanh.pop %v161
    %v201 = vtanh.pop %v164
    %v202 = vtanh.pop %v167
    %v203 = vtanh.pop %v170
    %v204 = vtanh.pop %v173
    %v205 = vtanh.pop %v176
    %v206 = vtanh.pop %v179
    %v207 = vtanh.pop %v182
    %v208 = vtanh.pop %v185
    %v209 = vtanh.pop %v188
    %v210 = vtanh.pop %v191
    %v211 = vtanh.pop %v194
    %v212 = vperm.slane %v46, 0
    %213 = vmatpush.msra.mxu0 %v45
    %214 = vmatpush.msra.mxu0 %v44
    %215 = vmatpush.msra.mxu0 %v43
    %216 = vmatpush.msra.mxu0 %v42
    %217 = vmatpush.msra.mxu0 %v41
    %218 = vmatpush.msra.mxu0 %v40
    %219 = vmatpush.msra.mxu0 %v39
    %220 = vmatpush.msra.mxu0 %v38
    %221 = vmatpush.msra.mxu0 %v37
    %222 = vmatpush.msra.mxu0 %v36
    %223 = vmatpush.msra.mxu0 %v35
    %224 = vmatpush.msra.mxu0 %v34
    %225 = vmatpush.msra.mxu0 %v33
    %226 = vmatpush.msra.mxu0 %v32
    %227 = vmatpush.msra.mxu0 %v31
    %228 = vmatpush.msra.mxu0 %v30
    %229 = vmatmul.f32.gmra.mxu0 %v196
    %v230 = vpop.f32.mrf.mxu0
    %v231 = vadd.f32 %v212, %v230
    %232 = vmatmul.f32.gmra.mxu0 %v197
    %v233 = vpop.f32.mrf.mxu0
    %v234 = vadd.f32 %v212, %v233
    %235 = vmatmul.f32.gmra.mxu0 %v198
    %v236 = vpop.f32.mrf.mxu0
    %v237 = vadd.f32 %v212, %v236
    %238 = vmatmul.f32.gmra.mxu0 %v199
    %v239 = vpop.f32.mrf.mxu0
    %v240 = vadd.f32 %v212, %v239
    %241 = vmatmul.f32.gmra.mxu0 %v200
    %v242 = vpop.f32.mrf.mxu0
    %v243 = vadd.f32 %v212, %v242
    %244 = vmatmul.f32.gmra.mxu0 %v201
    %v245 = vpop.f32.mrf.mxu0
    %v246 = vadd.f32 %v212, %v245
    %247 = vmatmul.f32.gmra.mxu0 %v202
    %v248 = vpop.f32.mrf.mxu0
    %v249 = vadd.f32 %v212, %v248
    %250 = vmatmul.f32.gmra.mxu0 %v203
    %v251 = vpop.f32.mrf.mxu0
    %v252 = vadd.f32 %v212, %v251
    %253 = vmatmul.f32.gmra.mxu0 %v204
    %v254 = vpop.f32.mrf.mxu0
    %v255 = vadd.f32 %v212, %v254
    %256 = vmatmul.f32.gmra.mxu0 %v205
    %v257 = vpop.f32.mrf.mxu0
    %v258 = vadd.f32 %v212, %v257
    %259 = vmatmul.f32.gmra.mxu0 %v206
    %v260 = vpop.f32.mrf.mxu0
    %v261 = vadd.f32 %v212, %v260
    %262 = vmatmul.f32.gmra.mxu0 %v207
    %v263 = vpop.f32.mrf.mxu0
    %v264 = vadd.f32 %v212, %v263
    %265 = vmatmul.f32.gmra.mxu0 %v208
    %v266 = vpop.f32.mrf.mxu0
    %v267 = vadd.f32 %v212, %v266
    %268 = vmatmul.f32.gmra.mxu0 %v209
    %v269 = vpop.f32.mrf.mxu0
    %v270 = vadd.f32 %v212, %v269
    %271 = vmatmul.f32.gmra.mxu0 %v210
    %v272 = vpop.f32.mrf.mxu0
    %v273 = vadd.f32 %v212, %v272
    %274 = vmatmul.f32.gmra.mxu0 %v211
    %v275 = vpop.f32.mrf.mxu0
    %v276 = vadd.f32 %v212, %v275
    %277 = vdwg.mxu0
    %v278 = vtanh.pop %v231
    %v279 = vtanh.pop %v234
    %v280 = vtanh.pop %v237
    %v281 = vtanh.pop %v240
    %v282 = vtanh.pop %v243
    %v283 = vtanh.pop %v246
    %v284 = vtanh.pop %v249
    %v285 = vtanh.pop %v252
    %v286 = vtanh.pop %v255
    %v287 = vtanh.pop %v258
    %v288 = vtanh.pop %v261
    %v289 = vtanh.pop %v264
    %v290 = vtanh.pop %v267
    %v291 = vtanh.pop %v270
    %v292 = vtanh.pop %v273
    %v293 = vtanh.pop %v276
    %v294 = vperm.slane %v64, 0
    %295 = vmatpush.msra.mxu0 %v63
    %296 = vmatpush.msra.mxu0 %v62
    %297 = vmatpush.msra.mxu0 %v61
    %298 = vmatpush.msra.mxu0 %v60
    %299 = vmatpush.msra.mxu0 %v59
    %300 = vmatpush.msra.mxu0 %v58
    %301 = vmatpush.msra.mxu0 %v57
    %302 = vmatpush.msra.mxu0 %v56
    %303 = vmatpush.msra.mxu0 %v55
    %304 = vmatpush.msra.mxu0 %v54
    %305 = vmatpush.msra.mxu0 %v53
    %306 = vmatpush.msra.mxu0 %v52
    %307 = vmatpush.msra.mxu0 %v51
    %308 = vmatpush.msra.mxu0 %v50
    %309 = vmatpush.msra.mxu0 %v49
    %310 = vmatpush.msra.mxu0 %v48
    %311 = vmatmul.f32.gmra.mxu0 %v278
    %v312 = vpop.f32.mrf.mxu0
    %v313 = vadd.f32 %v294, %v312
    %314 = vmatmul.f32.gmra.mxu0 %v279
    %v315 = vpop.f32.mrf.mxu0
    %v316 = vadd.f32 %v294, %v315
    %317 = vmatmul.f32.gmra.mxu0 %v280
    %v318 = vpop.f32.mrf.mxu0
    %v319 = vadd.f32 %v294, %v318
    %320 = vmatmul.f32.gmra.mxu0 %v281
    %v321 = vpop.f32.mrf.mxu0
    %v322 = vadd.f32 %v294, %v321
    %323 = vmatmul.f32.gmra.mxu0 %v282
    %v324 = vpop.f32.mrf.mxu0
    %v325 = vadd.f32 %v294, %v324
    %326 = vmatmul.f32.gmra.mxu0 %v283
    %v327 = vpop.f32.mrf.mxu0
    %v328 = vadd.f32 %v294, %v327
    %329 = vmatmul.f32.gmra.mxu0 %v284
    %v330 = vpop.f32.mrf.mxu0
    %v331 = vadd.f32 %v294, %v330
    %332 = vmatmul.f32.gmra.mxu0 %v285
    %v333 = vpop.f32.mrf.mxu0
    %v334 = vadd.f32 %v294, %v333
    %335 = vmatmul.f32.gmra.mxu0 %v286
    %v336 = vpop.f32.mrf.mxu0
    %v337 = vadd.f32 %v294, %v336
    %338 = vmatmul.f32.gmra.mxu0 %v287
    %v339 = vpop.f32.mrf.mxu0
    %v340 = vadd.f32 %v294, %v339
    %341 = vmatmul.f32.gmra.mxu0 %v288
    %v342 = vpop.f32.mrf.mxu0
    %v343 = vadd.f32 %v294, %v342
    %344 = vmatmul.f32.gmra.mxu0 %v289
    %v345 = vpop.f32.mrf.mxu0
    %v346 = vadd.f32 %v294, %v345
    %347 = vmatmul.f32.gmra.mxu0 %v290
    %v348 = vpop.f32.mrf.mxu0
    %v349 = vadd.f32 %v294, %v348
    %350 = vmatmul.f32.gmra.mxu0 %v291
    %v351 = vpop.f32.mrf.mxu0
    %v352 = vadd.f32 %v294, %v351
    %353 = vmatmul.f32.gmra.mxu0 %v292
    %v354 = vpop.f32.mrf.mxu0
    %v355 = vadd.f32 %v294, %v354
    %356 = vmatmul.f32.gmra.mxu0 %v293
    %v357 = vpop.f32.mrf.mxu0
    %v358 = vadd.f32 %v294, %v357
    %359 = vdwg.mxu0
    %360 = vxpose.xlu0.b32.start [1/16] %v313, 128
    %361 = vxpose.xlu0.b32.cont [2/16] %v316, 128
    %362 = vxpose.xlu0.b32.cont [3/16] %v319, 128
    %363 = vxpose.xlu0.b32.cont [4/16] %v322, 128
    %364 = vxpose.xlu0.b32.cont [5/16] %v325, 128
    %365 = vxpose.xlu0.b32.cont [6/16] %v328, 128
    %366 = vxpose.xlu0.b32.cont [7/16] %v331, 128
    %367 = vxpose.xlu0.b32.cont [8/16] %v334, 128
    %368 = vxpose.xlu0.b32.cont [9/16] %v337, 128
    %369 = vxpose.xlu0.b32.cont [10/16] %v340, 128
    %370 = vxpose.xlu0.b32.cont [11/16] %v343, 128
    %371 = vxpose.xlu0.b32.cont [12/16] %v346, 128
    %372 = vxpose.xlu0.b32.cont [13/16] %v349, 128
    %373 = vxpose.xlu0.b32.cont [14/16] %v352, 128
    %374 = vxpose.xlu0.b32.cont [15/16] %v355, 128
    %375 = vxpose.xlu0.b32.end [16/16] %v358, 128
    %v376 = vpop.trf.xlu0
    %v377 = vpop.trf.xlu0
    %v378 = vpop.trf.xlu0
    %v379 = vpop.trf.xlu0
    %v380 = vpop.trf.xlu0
    %v381 = vpop.trf.xlu0
    %v382 = vpop.trf.xlu0
    %v383 = vpop.trf.xlu0
    %v384 = vpop.trf.xlu0
    %v385 = vpop.trf.xlu0
    %v386 = vpop.trf.xlu0
    %v387 = vpop.trf.xlu0
    %v388 = vpop.trf.xlu0
    %v389 = vpop.trf.xlu0
    %v390 = vpop.trf.xlu0
    %v391 = vpop.trf.xlu0
    %392 = vst [vmem:[%s2] sm:$0x1] %v376
    // Predicated region
    $region14: #{critic_forward.1} parent=1 // pred_check
      _
    $region15: #{critic_forward.1} parent=1 // pred_check_branch
      %394 = sbr.rel (0) target = $region17
    $region16: #{critic_forward.1} parent=1 // pred_region
      _
    $region17: #{critic_forward.1} parent=1 // pred_fallthru
      _
    // Predicated region
    $region18: #{critic_forward.1} parent=1 // pred_check
      _
    $region19: #{critic_forward.1} parent=1 // pred_check_branch
      %396 = sbr.rel (0) target = $region21
    $region20: #{critic_forward.1} parent=1 // pred_region
      _
    $region21: #{critic_forward.1} parent=1 // pred_fallthru
      _
    %397 = vsyncpa [#allocation3], 1

</llo_original>
